<compile_context>
chip_gen: v6e
topology: v6e:2x2x1
jax: 0.10.0
libtpu: 0.0.40
codegen_flags: <defaults>
</compile_context>

<pallas_src>
import jax
import jax.numpy as jnp
from jax.experimental import pallas as pl
from jax.experimental.pallas import tpu as pltpu

LANE = 128          # TPU lane width; output feature dim is padded to a multiple.
MAX_SEQ_TILE = 512  # per measured tiled-add data, ~85% of HBM roofline at 512-row
                    # tiles; double-buffered block stays small on v7x's 64 MiB VMEM.


def _choose_seq_tile(seq_len):
    """Largest sublane-aligned sequence tile that evenly divides seq_len."""
    if seq_len <= MAX_SEQ_TILE:
        return seq_len
    for ts in range(MAX_SEQ_TILE, 7, -1):
        if seq_len % ts == 0 and ts % 8 == 0:   # 2nd-to-last block dim must be /8
            return ts
    return seq_len                              # fallback: single full-array block


def attention_kernel(x_ref, wv_ref, bvS_ref, o_ref, xsum_ref):
    # x_ref:    (B, ts, H)   current sequence tile, VMEM
    # wv_ref:   (H, O_pad)   value weight, pre-transposed + lane-padded (f32)
    # bvS_ref:  (1, O_pad)   S * value bias, lane-padded (f32)
    # o_ref:    (B, O_pad)   lane-dense context output
    # xsum_ref: (B, H)       f32 scratch accumulator for sum_s x[b, s, :]
    k = pl.program_id(0)

    @pl.when(k == 0)
    def _():
        xsum_ref[...] = jnp.zeros_like(xsum_ref)

    # Sequence-tile reduction in f32 (XLU sublane reduce), accumulated across
    # the "arbitrary" grid axis in VMEM scratch.
    xsum_ref[...] += jnp.sum(x_ref[...].astype(jnp.float32), axis=1)

    @pl.when(k == pl.num_programs(0) - 1)
    def _():
        # Linear map commutes with the sum: sum_s(x_s @ W + b) == (sum_s x_s) @ W + S*b
        ctx = jnp.dot(xsum_ref[...], wv_ref[...],
                      preferred_element_type=jnp.float32)       # (B, O_pad) on MXU
        o_ref[...] = (ctx + bvS_ref[...]).astype(o_ref.dtype)


def prepare_attention_params(wv, bv, seq_len):
    """One-time (init-time) parameter preparation.

    Transpose, cast to f32, lane-pad the value weight, and fold the seq_len
    scale into the bias so nothing but the kernel runs per call.
    Returns (wv_t_padded, bvS_padded, out_features).
    """
    O, H = wv.shape
    O_pad = ((O + LANE - 1) // LANE) * LANE
    wv_t = jnp.pad(wv.T.astype(jnp.float32), ((0, 0), (0, O_pad - O)))
    bvS = jnp.pad((jnp.float32(seq_len) * bv.astype(jnp.float32)).reshape(1, O),
                  ((0, 0), (0, O_pad - O)))
    return wv_t, bvS, O


def attention_forward(x, wv_t, bvS, out_features):
    """Forward pass of the PyTorch Attention module.

    x: (B, S, H).  wv_t/bvS are the precomputed, lane-padded value parameters
    from `prepare_attention_params` (the key/score parameters are mathematically
    dead -- softmax over a size-1 axis is identically 1.0 -- so they never reach
    the kernel).  Returns (B, 1, O), identical to the PyTorch module's output.
    """
    B, S, H = x.shape
    O_pad = wv_t.shape[1]

    ts = _choose_seq_tile(S)
    grid = (S // ts,)

    out_padded = pl.pallas_call(
        attention_kernel,
        out_shape=jax.ShapeDtypeStruct((B, O_pad), x.dtype),
        grid=grid,
        in_specs=[
            pl.BlockSpec((B, ts, H), lambda k: (0, k, 0)),     # x: tiled over S
            pl.BlockSpec((H, O_pad), lambda k: (0, 0)),        # Wv^T (padded, f32)
            pl.BlockSpec((1, O_pad), lambda k: (0, 0)),        # S * bv (padded, f32)
        ],
        # Same output block across the reduction axis -> resident accumulator;
        # only written on the final grid step.
        out_specs=pl.BlockSpec((B, O_pad), lambda k: (0, 0)),
        scratch_shapes=[pltpu.VMEM((B, H), jnp.float32)],
        # S is a reduction axis -> "arbitrary".  For v7x's 2 TCs a leading
        # "parallel" B axis would only pay off once per-core work >> 0.35us/step.
        compiler_params=pltpu.CompilerParams(
            dimension_semantics=("arbitrary",)),
    )(x, wv_t, bvS)

    return out_padded[:, :out_features].reshape(B, 1, out_features)


def init_linear(key, in_features, out_features):
    """Deterministic init mimicking nn.Linear's default uniform(-1/sqrt(in), 1/sqrt(in))."""
    kw, kb = jax.random.split(key)
    bound = 1.0 / jnp.sqrt(jnp.float32(in_features))
    w = jax.random.uniform(kw, (out_features, in_features), jnp.float32, -bound, bound)
    b = jax.random.uniform(kb, (out_features,), jnp.float32, -bound, bound)
    return w, b


def reference_forward(x, wk, bk, wv, bv, ws, bs):
    """Literal (unoptimized) transcription of the PyTorch module, for checking."""
    keys = jnp.einsum("bsh,oh->bso", x, wk) + bk
    values = jnp.einsum("bsh,oh->bso", x, wv) + bv
    scores = jnp.einsum("bso,uo->bsu", keys, ws) + bs      # (B, S, 1)
    attn = jax.nn.softmax(scores, axis=-1)                 # ones, by construction
    attn = jnp.transpose(attn, (0, 2, 1))                  # (B, 1, S)
    return attn @ values                                   # (B, 1, O)


if __name__ == "__main__":
    B, S, H, O = 2, 8, 32, 32

    key = jax.random.PRNGKey(0)
    kx, kk, kv, ks = jax.random.split(key, 4)

    x = jax.random.normal(kx, (B, S, H), jnp.float32)
    wk, bk = init_linear(kk, H, O)   # key:   Linear(H -> O)   (dead code in the module)
    wv, bv = init_linear(kv, H, O)   # value: Linear(H -> O)
    ws, bs = init_linear(ks, O, 1)   # score: Linear(O -> 1)   (dead code in the module)

    # One-time parameter prep (hoisted out of the per-call forward path).
    wv_t, bvS, out_features = prepare_attention_params(wv, bv, S)
    wv_t, bvS = jax.block_until_ready((wv_t, bvS))

    out = attention_forward(x, wv_t, bvS, out_features)
    out = jax.block_until_ready(out)

    ref = reference_forward(x, wk, bk, wv, bv, ws, bs)
    assert out.shape == (B, 1, O), out.shape
    assert jnp.allclose(out, ref, atol=1e-4, rtol=1e-4), "mismatch vs reference"

    print("KERNEL_OK")
</pallas_src>

<mosaic_0001>
module attributes {stable_mosaic.version = 11 : i64} {
  func.func @attention_kernel(%arg0: i32, %arg1: memref<2x8x32xf32, #tpu.memory_space<vmem>>, %arg2: memref<32x128xf32, #tpu.memory_space<vmem>>, %arg3: memref<1x128xf32, #tpu.memory_space<vmem>>, %arg4: memref<2x128xf32, #tpu.memory_space<vmem>>, %arg5: memref<2x32xf32, #tpu.memory_space<vmem>>) attributes {dimension_semantics = [#tpu.dimension_semantics<arbitrary>], iteration_bounds = array<i64: 1>, scalar_prefetch = 0 : i64, scratch_operands = 1 : i64, tpu.core_type = #tpu.core_type<tc>, window_params = [{transform_indices = @transform_0, window_bounds = array<i64: 2, 8, 32>}, {pipeline_mode = #tpu.pipeline_mode<synchronous>, transform_indices = @transform_1, window_bounds = array<i64: 32, 128>}, {pipeline_mode = #tpu.pipeline_mode<synchronous>, transform_indices = @transform_2, window_bounds = array<i64: 1, 128>}, {pipeline_mode = #tpu.pipeline_mode<synchronous>, transform_indices = @transform_3, window_bounds = array<i64: 2, 128>}]} {
    %c0_i32 = arith.constant 0 : i32
    %0 = arith.cmpi eq, %arg0, %c0_i32 : i32
    %1 = arith.extui %0 : i1 to i32
    %c0_i32_0 = arith.constant 0 : i32
    %2 = arith.cmpi ne, %1, %c0_i32_0 : i32
    scf.if %2 {
      %cst_9 = arith.constant 0.000000e+00 : f32
      %11 = vector.broadcast %cst_9 : f32 to vector<2x32xf32>
      %c0_10 = arith.constant 0 : index
      %c0_11 = arith.constant 0 : index
      %12 = vector.load %arg5[%c0_10, %c0_11] : memref<2x32xf32, #tpu.memory_space<vmem>>, vector<2x32xf32>
      tpu.vector_store %arg5[%c0_10, %c0_11], %11 {strides = array<i32>} : memref<2x32xf32, #tpu.memory_space<vmem>>, vector<2x32xf32>,
    } else {
    }
    %c0 = arith.constant 0 : index
    %c0_1 = arith.constant 0 : index
    %3 = vector.load %arg5[%c0, %c0_1] : memref<2x32xf32, #tpu.memory_space<vmem>>, vector<2x32xf32>
    %c0_2 = arith.constant 0 : index
    %c0_3 = arith.constant 0 : index
    %c0_4 = arith.constant 0 : index
    %4 = vector.load %arg1[%c0_2, %c0_3, %c0_4] : memref<2x8x32xf32, #tpu.memory_space<vmem>>, vector<2x8x32xf32>
    %cst = arith.constant dense<0.000000e+00> : vector<2x32xf32>
    %5 = vector.multi_reduction <add>, %4, %cst [1] : vector<2x8x32xf32> to vector<2x32xf32>
    %6 = arith.addf %3, %5 : vector<2x32xf32>
    %c0_5 = arith.constant 0 : index
    %c0_6 = arith.constant 0 : index
    %7 = vector.load %arg5[%c0_5, %c0_6] : memref<2x32xf32, #tpu.memory_space<vmem>>, vector<2x32xf32>
    tpu.vector_store %arg5[%c0_5, %c0_6], %6 {strides = array<i32>} : memref<2x32xf32, #tpu.memory_space<vmem>>, vector<2x32xf32>,
    %c0_i32_7 = arith.constant 0 : i32
    %8 = arith.cmpi eq, %arg0, %c0_i32_7 : i32
    %9 = arith.extui %8 : i1 to i32
    %c0_i32_8 = arith.constant 0 : i32
    %10 = arith.cmpi ne, %9, %c0_i32_8 : i32
    scf.if %10 {
      %c0_9 = arith.constant 0 : index
      %c0_10 = arith.constant 0 : index
      %11 = vector.load %arg5[%c0_9, %c0_10] : memref<2x32xf32, #tpu.memory_space<vmem>>, vector<2x32xf32>
      %c0_11 = arith.constant 0 : index
      %c0_12 = arith.constant 0 : index
      %12 = vector.load %arg2[%c0_11, %c0_12] : memref<32x128xf32, #tpu.memory_space<vmem>>, vector<32x128xf32>
      %cst_13 = arith.constant dense<0.000000e+00> : vector<2x128xf32>
      %13 = tpu.matmul %11, %12, %cst_13 {dimension_numbers = #tpu.dot_dimension_numbers<[1], [0], [0], [1], [0, 0, 1, 1], [], []>} : vector<2x32xf32>, vector<32x128xf32>, vector<2x128xf32> -> vector<2x128xf32>
      %c0_14 = arith.constant 0 : index
      %c0_15 = arith.constant 0 : index
      %14 = vector.load %arg3[%c0_14, %c0_15] : memref<1x128xf32, #tpu.memory_space<vmem>>, vector<1x128xf32>
      %15 = vector.broadcast %14 : vector<1x128xf32> to vector<2x128xf32>
      %16 = arith.addf %13, %15 : vector<2x128xf32>
      %c0_16 = arith.constant 0 : index
      %c0_17 = arith.constant 0 : index
      %17 = vector.load %arg4[%c0_16, %c0_17] : memref<2x128xf32, #tpu.memory_space<vmem>>, vector<2x128xf32>
      tpu.vector_store %arg4[%c0_16, %c0_17], %16 {strides = array<i32>} : memref<2x128xf32, #tpu.memory_space<vmem>>, vector<2x128xf32>,
    } else {
    }
    return
  }
  func.func @transform_0(%arg0: i32) -> (i32, i32, i32) {
    %c0_i32 = arith.constant 0 : i32
    %c0_i32_0 = arith.constant 0 : i32
    %c0_i32_1 = arith.constant 0 : i32
    return %c0_i32, %arg0, %c0_i32_0 : i32, i32, i32
  }
  func.func @transform_1(%arg0: i32) -> (i32, i32) {
    %c0_i32 = arith.constant 0 : i32
    %c0_i32_0 = arith.constant 0 : i32
    %c0_i32_1 = arith.constant 0 : i32
    return %c0_i32, %c0_i32_0 : i32, i32
  }
  func.func @transform_2(%arg0: i32) -> (i32, i32) {
    %c0_i32 = arith.constant 0 : i32
    %c0_i32_0 = arith.constant 0 : i32
    %c0_i32_1 = arith.constant 0 : i32
    return %c0_i32, %c0_i32_0 : i32, i32
  }
  func.func @transform_3(%arg0: i32) -> (i32, i32) {
    %c0_i32 = arith.constant 0 : i32
    %c0_i32_0 = arith.constant 0 : i32
    %c0_i32_1 = arith.constant 0 : i32
    return %c0_i32, %c0_i32_0 : i32, i32
  }
}

</mosaic_0001>

<llo_original>
// kernel: tpu_custom_call.1
$region0: #{tpu_custom_call.1}
  #allocation0 [shape = 'u32[]', space=smem, size = 0x4, offset = 0x4, fixed_abs, tag = 'smem constant byte address 0x4 - core index']
  #allocation1 [shape = 'u32[144,128]{1,0:T(1,128)}', space=vmem, size = 0x12000, scoped, tag = 'internal scratch']
  #allocation2 [shape = 'f32[2,32]{1,0:T(2,128)}', space=vmem, size = 0x400, scoped, tag = 'scratch operand']
  %s0 = inlined_call_operand.hbm [shape: f32[2,8,32], index: 0, kind: input, shape index: {}]
  %s1 = inlined_call_operand.hbm [shape: f32[32,128], index: 1, kind: input, shape index: {}]
  %s2 = inlined_call_operand.vmem [shape: f32[1,128], index: 2, kind: input, shape index: {}]
  %s3 = inlined_call_operand.hbm [shape: f32[2,128], index: 3, kind: output, shape index: {}]
  %s4 = sld [smem:[#allocation0]]
  $region38: #{tpu_custom_call.1} parent=0
    _
  %s6 = ssub.s32 1, %s4
  %s7 = scalar_select 0, %s6, %s4
  $region1: #{tpu_custom_call.1} parent=0
    #allocation3 [shape = 'u8[8192]{0}', space=vmem, size = 0x2000, scoped, tag = 'input window, operand 0, single buffered']
    #allocation4 [shape = 's32[1]{0}', space=sflag, size = 0x4, scoped, tag = 'scoped memory for tpu_custom_call.1']
    #allocation5 [shape = 's32[1]{0}', space=sflag, size = 0x4, scoped, tag = 'scoped memory for tpu_custom_call.1']
    #allocation6 [shape = 'u8[16384]{0}', space=vmem, size = 0x4000, scoped, tag = 'input window, operand 1, single buffered']
    #allocation7 [shape = 's32[1]{0}', space=sflag, size = 0x4, scoped, tag = 'scoped memory for tpu_custom_call.1']
    #allocation8 [shape = 'u8[1024]{0}', space=vmem, size = 0x400, scoped, tag = 'output window, operand 0, single buffered']
    %8 = vsyncpa [#allocation4], 0
    %9 = vsyncpa [#allocation7], 0
    %10 = vsyncpa [#allocation5], 0
    // Predicated region
    $region2: #{tpu_custom_call.1} parent=1 // pred_check
      _
    $region3: #{tpu_custom_call.1} parent=1 // pred_check_branch
      %12 = sbr.rel (0) target = $region5
    $region4: #{tpu_custom_call.1} parent=1 // pred_region
      %s14 = ssub.s32 256, 256
      %15 = vsyncadd [#allocation4], %s14
      %s16 = sshll.u32 [#allocation3], 4
      %s17 = int_to_ptr.vmem [resolvable:$true] %s16
      %22 = dma.hbm_to_vmem [thread:$0]  %s0, 256, %s17, [#allocation4], 128, 128, 8
    $region5: #{tpu_custom_call.1} parent=1 // pred_fallthru
      _
    // Predicated region
    $region6: #{tpu_custom_call.1} parent=1 // pred_check
      _
    $region7: #{tpu_custom_call.1} parent=1 // pred_check_branch
      %24 = sbr.rel (0) target = $region9
    $region8: #{tpu_custom_call.1} parent=1 // pred_region
      %s26 = ssub.s32 512, 512
      %27 = vsyncadd [#allocation7], %s26
      %s28 = sshll.u32 [#allocation6], 4
      %s29 = int_to_ptr.vmem [resolvable:$true] %s28
      %34 = dma.hbm_to_vmem [thread:$0]  %s1, 512, %s29, [#allocation7], 128, 128, 8
    $region9: #{tpu_custom_call.1} parent=1 // pred_fallthru
      _
    // Predicated region
    $region10: #{tpu_custom_call.1} parent=1 // pred_check
      _
    $region11: #{tpu_custom_call.1} parent=1 // pred_check_branch
      %36 = sbr.rel (0) target = $region13
    $region12: #{tpu_custom_call.1} parent=1 // pred_region
      _
    $region13: #{tpu_custom_call.1} parent=1 // pred_fallthru
      _
    // Predicated region
    $region14: #{tpu_custom_call.1} parent=1 // pred_check
      _
    $region15: #{tpu_custom_call.1} parent=1 // pred_check_branch
      %38 = sbr.rel (0) target = $region17
    $region16: #{tpu_custom_call.1} parent=1 // pred_region
      %39 = dma.done [#allocation4], 256
    $region17: #{tpu_custom_call.1} parent=1 // pred_fallthru
      _
    // Predicated region
    $region18: #{tpu_custom_call.1} parent=1 // pred_check
      _
    $region19: #{tpu_custom_call.1} parent=1 // pred_check_branch
      %41 = sbr.rel (0) target = $region21
    $region20: #{tpu_custom_call.1} parent=1 // pred_region
      %42 = dma.done [#allocation7], 512
    $region21: #{tpu_custom_call.1} parent=1 // pred_fallthru
      _
    %p43 = scmp.eq.s32.totalorder 0, 0
    // Predicated region
    $region22: #{tpu_custom_call.1} parent=1 // pred_check
      %p44 = pneg %p43
    $region23: #{tpu_custom_call.1} parent=1 // pred_check_branch
      %46 = sbr.rel (%p44) target = $region25
    $region24: #{tpu_custom_call.1} parent=1 // pred_region
      %vm47 = vcmask 254976
      %48 = vst.msk [vmem:[#allocation2] sm:$0x3] %vm47, 0.0
    $region25: #{tpu_custom_call.1} parent=1 // pred_fallthru
      _
    %v49 = vld [vmem:[#allocation2] sm:$0x3]
    %v50 = vld [vmem:[#allocation3] sm:$0xff]
    %v51 = vld [vmem:[#allocation3 + $0x8] sm:$0xff]
    %vm52 = vcmask 261120
    %v53 = vsel %vm52, %v50, 0.0
    %v54 = vrot.slane %v53, 4
    %v55 = vadd.f32 %v53, %v54
    %v56 = vrot.slane %v55, 2
    %v57 = vadd.f32 %v55, %v56
    %v58 = vrot.slane %v57, 1
    %v59 = vadd.f32 %v57, %v58
    %v60 = vsel %vm52, %v51, 0.0
    %v61 = vrot.slane %v60, 4
    %v62 = vadd.f32 %v60, %v61
    %v63 = vrot.slane %v62, 2
    %v64 = vadd.f32 %v62, %v63
    %v65 = vrot.slane %v64, 1
    %v66 = vadd.f32 %v64, %v65
    %vm69 = vcmask 1041409
    %v70 = vsel %vm69, %v66, %v59
    %v72 = vadd.f32 %v49, %v70
    %vm73 = vcmask 254976
    %74 = vst.msk [vmem:[#allocation2] sm:$0x3] %vm73, %v72
    // Predicated region
    $region26: #{tpu_custom_call.1} parent=1 // pred_check
      %p75 = pneg %p43
    $region27: #{tpu_custom_call.1} parent=1 // pred_check_branch
      %77 = sbr.rel (%p75) target = $region29
    $region28: #{tpu_custom_call.1} parent=1 // pred_region
      %v78 = vld [vmem:[#allocation2] sm:$0x3]
      %v79 = vld [vmem:[#allocation6] sm:$0xff]
      %v80 = vld [vmem:[#allocation6 + $0x8] sm:$0xff]
      %v81 = vld [vmem:[#allocation6 + $0x10] sm:$0xff]
      %v82 = vld [vmem:[#allocation6 + $0x18] sm:$0xff]
      %v83 = vld [vmem:[%s2] sm:$0x1]
      %v85 = vlaneseq
      %v86 = vshrl.u32 %v85, 7
      %v87 = vsub.s32 0, %v86
      %v88 = vrot.slane %v83, %v87
      %v91 = vsel %vm52, %v78, 0
      %93 = vmatprep.subr.mxu0 0.0
      %94 = vmatpush1.msra.mxu0 0.0
      %95 = vmatprep.subr.mxu0 0.0
      %96 = vmatpush1.msra.mxu0 0.0
      %97 = vmatprep.subr.mxu0 0.0
      %98 = vmatpush1.msra.mxu0 0.0
      %99 = vmatprep.subr.mxu0 0.0
      %100 = vmatpush1.msra.mxu0 0.0
      %101 = vmatprep.subr.mxu0 0.0
      %102 = vmatpush1.msra.mxu0 0.0
      %103 = vmatprep.subr.mxu0 0.0
      %104 = vmatpush1.msra.mxu0 0.0
      %105 = vmatprep.subr.mxu0 0.0
      %106 = vmatpush1.msra.mxu0 0.0
      %107 = vmatprep.subr.mxu0 0.0
      %108 = vmatpush1.msra.mxu0 0.0
      %109 = vmatprep.subr.mxu0 0.0
      %110 = vmatpush1.msra.mxu0 0.0
      %111 = vmatprep.subr.mxu0 0.0
      %112 = vmatpush1.msra.mxu0 0.0
      %113 = vmatprep.subr.mxu0 0.0
      %114 = vmatpush1.msra.mxu0 0.0
      %115 = vmatprep.subr.mxu0 0.0
      %116 = vmatpush1.msra.mxu0 0.0
      %117 = vmatprep.subr.mxu0 0.0
      %118 = vmatpush1.msra.mxu0 %v82
      %119 = vmatprep.subr.mxu0 0.0
      %120 = vmatpush1.msra.mxu0 %v81
      %121 = vmatprep.subr.mxu0 0.0
      %122 = vmatpush1.msra.mxu0 %v80
      %123 = vmatprep.subr.mxu0 0.0
      %124 = vmatpush1.msra.mxu0 %v79
      %125 = vmatprep.subr.mxu0 0.0
      %126 = vmatpush2.msra.mxu0 0.0
      %127 = vmatprep.subr.mxu0 0.0
      %128 = vmatpush2.msra.mxu0 0.0
      %129 = vmatprep.subr.mxu0 0.0
      %130 = vmatpush2.msra.mxu0 0.0
      %131 = vmatprep.subr.mxu0 0.0
      %132 = vmatpush2.msra.mxu0 0.0
      %133 = vmatprep.subr.mxu0 0.0
      %134 = vmatpush2.msra.mxu0 0.0
      %135 = vmatprep.subr.mxu0 0.0
      %136 = vmatpush2.msra.mxu0 0.0
      %137 = vmatprep.subr.mxu0 0.0
      %138 = vmatpush2.msra.mxu0 0.0
      %139 = vmatprep.subr.mxu0 0.0
      %140 = vmatpush2.msra.mxu0 0.0
      %141 = vmatprep.subr.mxu0 0.0
      %142 = vmatpush2.msra.mxu0 0.0
      %143 = vmatprep.subr.mxu0 0.0
      %144 = vmatpush2.msra.mxu0 0.0
      %145 = vmatprep.subr.mxu0 0.0
      %146 = vmatpush2.msra.mxu0 0.0
      %147 = vmatprep.subr.mxu0 0.0
      %148 = vmatpush2.msra.mxu0 0.0
      %149 = vmatprep.subr.mxu0 0.0
      %150 = vmatpush2.msra.mxu0 0.0
      %151 = vmatprep.subr.mxu0 0.0
      %152 = vmatpush2.msra.mxu0 0.0
      %153 = vmatprep.subr.mxu0 0.0
      %154 = vmatpush2.msra.mxu0 0.0
      %155 = vmatprep.subr.mxu0 0.0
      %156 = vmatpush2.msra.mxu0 0.0
      %157 = vmatprep.mubr.f32.mxu0 0.0
      %158 = vmatmul.mubr.f32.gmra.mxu0 %v91
      %v159 = vpop.f32.mrf.mxu0
      %v160 = vadd.f32 %v88, %v159
      %v161 = vpop.f32.mrf.mxu0
      %162 = vdwg.mxu0
      %163 = vst [vmem:[#allocation8] sm:$0x3] %v160
    $region29: #{tpu_custom_call.1} parent=1 // pred_fallthru
      _
    // Predicated region
    $region30: #{tpu_custom_call.1} parent=1 // pred_check
      _
    $region31: #{tpu_custom_call.1} parent=1 // pred_check_branch
      %165 = sbr.rel (0) target = $region33
    $region32: #{tpu_custom_call.1} parent=1 // pred_region
      %s167 = ssub.s32 32, 32
      %168 = vsyncadd [#allocation5], %s167
      %s170 = sshll.u32 [#allocation8], 4
      %s171 = int_to_ptr.vmem [resolvable:$true] %s170
      %173 = dma.vmem_to_hbm [thread:$0]  %s171, 32, %s3, [#allocation5]
    $region33: #{tpu_custom_call.1} parent=1 // pred_fallthru
      _
    // Predicated region
    $region34: #{tpu_custom_call.1} parent=1 // pred_check
      _
    $region35: #{tpu_custom_call.1} parent=1 // pred_check_branch
      %175 = sbr.rel (0) target = $region37
    $region36: #{tpu_custom_call.1} parent=1 // pred_region
      %176 = dma.done [#allocation5], 32
    $region37: #{tpu_custom_call.1} parent=1 // pred_fallthru
      _
    %177 = vsyncpa [#allocation4], 1
    %178 = vsyncpa [#allocation7], 1
    %179 = vsyncpa [#allocation5], 1

</llo_original>
